<compile_context>
chip_gen: v5e
topology: v5e:2x2
jax: 0.10.0
libtpu: 0.0.40
codegen_flags: <defaults>
</compile_context>

<pallas_src>
import jax
import jax.numpy as jnp
from jax.experimental import pallas as pl
from jax.experimental.pallas import tpu as pltpu


def _proj_pos_kernel(emb_ref, w_ref, b_ref, out_ref):
    # emb_ref: (S, C_in)     trainable position table (batch-invariant)
    # w_ref:   (C_in, C_out) projection weight (transposed PyTorch layout)
    # b_ref:   (1, C_out)    projection bias
    # out_ref: (TB, S, C_out) output slab for this batch block
    proj = jnp.dot(emb_ref[...], w_ref[...], preferred_element_type=jnp.float32)
    proj = (proj + b_ref[...]).astype(out_ref.dtype)
    # Single broadcast-store of the projected table across the batch block.
    out_ref[...] = jnp.broadcast_to(proj[None], out_ref.shape)


def position_encoding_projector_forward(pos_embs, w, b, batch_size, *, batch_block=None):
    """Forward of PositionEncodingProjector(TrainablePositionEncoding).

    pos_embs: (index_dim, num_channels)   trainable base table.
    w:        (num_channels, output_size) Linear weight (already transposed).
    b:        (1, output_size)            Linear bias.
    returns:  (batch_size, index_dim, output_size)
    """
    index_dim, num_channels = pos_embs.shape
    assert w.shape[0] == num_channels
    output_size = w.shape[1]
    assert b.shape == (1, output_size)

    if batch_block is None:
        # Largest batch slab that keeps the (double-buffered) output block well
        # inside VMEM, while still giving >= 2 grid steps when batch >= 2 so
        # both v7x TensorCores get work (axis is marked "parallel").
        out_bytes_per_batch = index_dim * output_size * jnp.dtype(pos_embs.dtype).itemsize
        max_tb = max(1, (4 * 1024 * 1024) // max(out_bytes_per_batch, 1))
        batch_block = max(1, min(max_tb, pl.cdiv(batch_size, 2)))
    batch_block = min(batch_block, batch_size)
    grid = (pl.cdiv(batch_size, batch_block),)

    return pl.pallas_call(
        _proj_pos_kernel,
        out_shape=jax.ShapeDtypeStruct((batch_size, index_dim, output_size),
                                       pos_embs.dtype),
        grid=grid,
        in_specs=[
            # All inputs are grid-invariant; full-array blocks (satisfy the
            # (8,128) rule by equaling the full array dims).
            pl.BlockSpec((index_dim, num_channels), lambda i: (0, 0)),
            pl.BlockSpec((num_channels, output_size), lambda i: (0, 0)),
            pl.BlockSpec((1, output_size), lambda i: (0, 0)),
        ],
        out_specs=pl.BlockSpec((batch_block, index_dim, output_size),
                               lambda i: (i, 0, 0)),
        compiler_params=pltpu.CompilerParams(
            dimension_semantics=("parallel",)),
    )(pos_embs, w, b)


def init_pos_embs(key, index_dim, num_channels, init_scale=0.02, dtype=jnp.float32):
    """trunc_normal_(std=init_scale) init of the trainable table (deterministic)."""
    z = jax.random.truncated_normal(key, -2.0 / init_scale, 2.0 / init_scale,
                                    (index_dim, num_channels), jnp.float32)
    return (z * init_scale).astype(dtype)


if __name__ == "__main__":
    batch_size = 2
    index_dim = 16       # base position-encoding sequence length
    num_channels = 64    # base position-encoding channels (Linear in_features)
    output_size = 128    # projection target size (Linear out_features)

    key = jax.random.PRNGKey(0)
    k_emb, k_w, k_b = jax.random.split(key, 3)

    pos_embs = init_pos_embs(k_emb, index_dim, num_channels)
    # nn.LazyLinear default init: U(-1/sqrt(fan_in), 1/sqrt(fan_in)), deterministic here.
    bound = 1.0 / (num_channels ** 0.5)
    w = jax.random.uniform(k_w, (num_channels, output_size), jnp.float32, -bound, bound)
    b = jax.random.uniform(k_b, (1, output_size), jnp.float32, -bound, bound)

    out = position_encoding_projector_forward(pos_embs, w, b, batch_size)
    out = jax.block_until_ready(out)

    # Reference: broadcast the base encoding over batch, then the Linear projection.
    base = jnp.broadcast_to(pos_embs[None], (batch_size, index_dim, num_channels))
    ref = jnp.einsum("bsc,co->bso", base, w,
                     preferred_element_type=jnp.float32) + b

    assert out.shape == (batch_size, index_dim, output_size), out.shape
    assert out.dtype == pos_embs.dtype
    assert jnp.array_equal(out[0], out[1])  # exact batch broadcast of the projected table
    max_err = float(jnp.max(jnp.abs(out - ref)))
    assert jnp.allclose(out, ref, atol=2e-4, rtol=1e-3), max_err

    print("KERNEL_OK")
</pallas_src>

<mosaic_0001>
module attributes {stable_mosaic.version = 11 : i64} {
  func.func @_proj_pos_kernel(%arg0: i32, %arg1: memref<16x64xf32, #tpu.memory_space<vmem>>, %arg2: memref<64x128xf32, #tpu.memory_space<vmem>>, %arg3: memref<1x128xf32, #tpu.memory_space<vmem>>, %arg4: memref<1x16x128xf32, #tpu.memory_space<vmem>>) attributes {dimension_semantics = [#tpu.dimension_semantics<parallel>], iteration_bounds = array<i64: 2>, scalar_prefetch = 0 : i64, scratch_operands = 0 : i64, tpu.core_type = #tpu.core_type<tc>, window_params = [{pipeline_mode = #tpu.pipeline_mode<synchronous>, transform_indices = @transform_0, window_bounds = array<i64: 16, 64>}, {pipeline_mode = #tpu.pipeline_mode<synchronous>, transform_indices = @transform_1, window_bounds = array<i64: 64, 128>}, {pipeline_mode = #tpu.pipeline_mode<synchronous>, transform_indices = @transform_2, window_bounds = array<i64: 1, 128>}, {transform_indices = @transform_3, window_bounds = array<i64: 1, 16, 128>}]} {
    %c0 = arith.constant 0 : index
    %c0_0 = arith.constant 0 : index
    %0 = vector.load %arg1[%c0, %c0_0] : memref<16x64xf32, #tpu.memory_space<vmem>>, vector<16x64xf32>
    %c0_1 = arith.constant 0 : index
    %c0_2 = arith.constant 0 : index
    %1 = vector.load %arg2[%c0_1, %c0_2] : memref<64x128xf32, #tpu.memory_space<vmem>>, vector<64x128xf32>
    %cst = arith.constant dense<0.000000e+00> : vector<16x128xf32>
    %2 = tpu.matmul %0, %1, %cst {dimension_numbers = #tpu.dot_dimension_numbers<[1], [0], [0], [1], [0, 0, 1, 1], [], []>} : vector<16x64xf32>, vector<64x128xf32>, vector<16x128xf32> -> vector<16x128xf32>
    %c0_3 = arith.constant 0 : index
    %c0_4 = arith.constant 0 : index
    %3 = vector.load %arg3[%c0_3, %c0_4] : memref<1x128xf32, #tpu.memory_space<vmem>>, vector<1x128xf32>
    %4 = vector.broadcast %3 : vector<1x128xf32> to vector<16x128xf32>
    %5 = arith.addf %2, %4 : vector<16x128xf32>
    %6 = vector.shape_cast %5 : vector<16x128xf32> to vector<1x16x128xf32>
    %c0_5 = arith.constant 0 : index
    %c0_6 = arith.constant 0 : index
    %c0_7 = arith.constant 0 : index
    %7 = vector.load %arg4[%c0_5, %c0_6, %c0_7] : memref<1x16x128xf32, #tpu.memory_space<vmem>>, vector<1x16x128xf32>
    tpu.vector_store %arg4[%c0_5, %c0_6, %c0_7], %6 {strides = array<i32>} : memref<1x16x128xf32, #tpu.memory_space<vmem>>, vector<1x16x128xf32>,
    return
  }
  func.func @transform_0(%arg0: i32) -> (i32, i32) {
    %c0_i32 = arith.constant 0 : i32
    %c0_i32_0 = arith.constant 0 : i32
    %c0_i32_1 = arith.constant 0 : i32
    return %c0_i32, %c0_i32_0 : i32, i32
  }
  func.func @transform_1(%arg0: i32) -> (i32, i32) {
    %c0_i32 = arith.constant 0 : i32
    %c0_i32_0 = arith.constant 0 : i32
    %c0_i32_1 = arith.constant 0 : i32
    return %c0_i32, %c0_i32_0 : i32, i32
  }
  func.func @transform_2(%arg0: i32) -> (i32, i32) {
    %c0_i32 = arith.constant 0 : i32
    %c0_i32_0 = arith.constant 0 : i32
    %c0_i32_1 = arith.constant 0 : i32
    return %c0_i32, %c0_i32_0 : i32, i32
  }
  func.func @transform_3(%arg0: i32) -> (i32, i32, i32) {
    %c0_i32 = arith.constant 0 : i32
    %c0_i32_0 = arith.constant 0 : i32
    %c0_i32_1 = arith.constant 0 : i32
    return %arg0, %c0_i32, %c0_i32_0 : i32, i32, i32
  }
}

</mosaic_0001>

<llo_original>
// kernel: tpu_custom_call.1
$region0: #{tpu_custom_call.1}
  #allocation0 [shape = 'u32[]', space=smem, size = 0x4, offset = 0x4, fixed_abs, tag = 'smem constant byte address 0x4 - core index']
  #allocation1 [shape = 'u32[72,128]{1,0:T(1,128)}', space=vmem, size = 0x9000, scoped, tag = 'internal scratch']
  %s0 = inlined_call_operand.hbm [shape: f32[16,64], index: 0, kind: input, shape index: {}]
  %s1 = inlined_call_operand.hbm [shape: f32[64,128], index: 1, kind: input, shape index: {}]
  %s2 = inlined_call_operand.vmem [shape: f32[1,128], index: 2, kind: input, shape index: {}]
  %s3 = inlined_call_operand.hbm [shape: f32[2,16,128], index: 3, kind: output, shape index: {}]
  %s4 = sld [smem:[#allocation0]]
  $region53: #{tpu_custom_call.1} parent=0
    _
  %s6 = ssub.s32 1, %s4
  %s7 = scalar_select 0, %s6, %s4
  $region1: #{tpu_custom_call.1} parent=0
    #allocation2 [shape = 'u8[8192]{0}', space=vmem, size = 0x2000, scoped, tag = 'input window, operand 0, single buffered']
    #allocation3 [shape = 's32[2]{0}', space=sflag, size = 0x8, scoped, tag = 'scoped memory for tpu_custom_call.1']
    #allocation4 [shape = 's32[2]{0}', space=sflag, size = 0x8, scoped, tag = 'scoped memory for tpu_custom_call.1']
    #allocation5 [shape = 'u8[32768]{0}', space=vmem, size = 0x8000, scoped, tag = 'input window, operand 1, single buffered']
    #allocation6 [shape = 's32[1]{0}', space=sflag, size = 0x4, scoped, tag = 'scoped memory for tpu_custom_call.1']
    #allocation7 [shape = 'u8[16384]{0}', space=vmem, size = 0x4000, scoped, tag = 'output window, operand 0']
    %8 = vsyncpa [#allocation3], 0
    %9 = vsyncpa [#allocation6], 0
    %10 = vsyncpa [#allocation4], 0
    %s11 = scalar_lea.sflag [#allocation4], 1
    %12 = vsyncpa %s11, 0
    loop: start=0, step=1, limit=4
    $region2: #{tpu_custom_call.1} parent=1 // loop_pre_header
      _
    $region3: #{tpu_custom_call.1} parent=1 // loop_header
      %s14 = sphi 0, %s18
      %p15 = scmp.ge.s32.totalorder %s14, 4
      %s22 = sphi 0, %s22
      %s24 = sphi 0, %s22
      %s25 = sphi 0, %s24
      %s39 = sphi 0, %s25
      %s43 = sphi 0, %s43
      %s45 = sphi 0, %s43
      %s46 = sphi 0, %s45
      %s60 = sphi 0, %s46
      %s64 = sphi 0, %s64
      %s66 = sphi 0, %s64
      %s67 = sphi 0, %s66
      %s81 = sphi 0, %s67
      %s87 = sphi 0, %s89
      %s90 = sphi 0, %s87
      %s91 = sphi 0, %s90
      %s107 = sphi 0, %s91
    $region4: #{tpu_custom_call.1} parent=1 // loop_header_branch
      %17 = sbr.rel (%p15) target = $region8
    $region5: #{tpu_custom_call.1} parent=1 // loop_body
      %s19 = ssub.s32 %s14, 1
      %s20 = ssub.s32 %s14, 2
      %s21 = sadd.s32 %s14, 1
      %s23 = sadd.s32 %s22, 1
      %p26 = scmp.eq.s32.totalorder %s14, 1
      %p27 = scmp.ne.s32.totalorder %s22, %s24
      %p28 = scmp.eq.s32.totalorder %s14, 0
      %p29 = por %p27, %p28
      %p30 = scmp.ne.s32.totalorder %s22, %s24
      %p31 = scmp.eq.s32.totalorder %s19, 1
      %p32 = por %p30, %p31
      %p33 = scmp.ne.s32.totalorder %s24, %s25
      %p34 = scmp.eq.s32.totalorder %s19, 0
      %p35 = por %p33, %p34
      %p36 = scmp.ne.s32.totalorder %s24, %s25
      %p37 = scmp.eq.s32.totalorder %s20, 1
      %p38 = por %p36, %p37
      %p40 = scmp.ne.s32.totalorder %s25, %s39
      %p41 = scmp.eq.s32.totalorder %s20, 0
      %p42 = por %p40, %p41
      %s44 = sadd.s32 %s43, 1
      %p47 = scmp.eq.s32.totalorder %s14, 1
      %p48 = scmp.ne.s32.totalorder %s43, %s45
      %p49 = scmp.eq.s32.totalorder %s14, 0
      %p50 = por %p48, %p49
      %p51 = scmp.ne.s32.totalorder %s43, %s45
      %p52 = scmp.eq.s32.totalorder %s19, 1
      %p53 = por %p51, %p52
      %p54 = scmp.ne.s32.totalorder %s45, %s46
      %p55 = scmp.eq.s32.totalorder %s19, 0
      %p56 = por %p54, %p55
      %p57 = scmp.ne.s32.totalorder %s45, %s46
      %p58 = scmp.eq.s32.totalorder %s20, 1
      %p59 = por %p57, %p58
      %p61 = scmp.ne.s32.totalorder %s46, %s60
      %p62 = scmp.eq.s32.totalorder %s20, 0
      %p63 = por %p61, %p62
      %s65 = sadd.s32 %s64, 1
      %p68 = scmp.eq.s32.totalorder %s14, 1
      %p69 = scmp.ne.s32.totalorder %s64, %s66
      %p70 = scmp.eq.s32.totalorder %s14, 0
      %p71 = por %p69, %p70
      %p72 = scmp.ne.s32.totalorder %s64, %s66
      %p73 = scmp.eq.s32.totalorder %s19, 1
      %p74 = por %p72, %p73
      %p75 = scmp.ne.s32.totalorder %s66, %s67
      %p76 = scmp.eq.s32.totalorder %s19, 0
      %p77 = por %p75, %p76
      %p78 = scmp.ne.s32.totalorder %s66, %s67
      %p79 = scmp.eq.s32.totalorder %s20, 1
      %p80 = por %p78, %p79
      %p82 = scmp.ne.s32.totalorder %s67, %s81
      %p83 = scmp.eq.s32.totalorder %s20, 0
      %p84 = por %p82, %p83
      %s85 = ssub.s32 %s14, %s21
      %p86 = scmp.eq.s32.totalorder %s85, 0
      %s88 = sadd.s32 %s87, 1
      %s89 = scalar_select %p86, %s87, %s88
      %p92 = pneg %p86
      %p93 = scmp.eq.s32.totalorder %s14, 1
      %p94 = por %p92, %p93
      %p95 = scmp.ne.s32.totalorder %s87, %s90
      %p96 = scmp.eq.s32.totalorder %s14, 0
      %p97 = por %p95, %p96
      %p98 = scmp.ne.s32.totalorder %s87, %s90
      %p99 = scmp.eq.s32.totalorder %s19, 1
      %p100 = por %p98, %p99
      %p101 = scmp.ne.s32.totalorder %s90, %s91
      %p102 = scmp.eq.s32.totalorder %s19, 0
      %p103 = por %p101, %p102
      %p104 = scmp.ne.s32.totalorder %s90, %s91
      %p105 = scmp.eq.s32.totalorder %s20, 1
      %p106 = por %p104, %p105
      %p108 = scmp.ne.s32.totalorder %s91, %s107
      %p109 = scmp.eq.s32.totalorder %s20, 0
      %p110 = por %p108, %p109
      %p111 = scmp.le.s32.totalorder 1, %s14
      %p112 = scmp.lt.s32.totalorder %s14, 3
      %p113 = pnand %p111, %p112
      %p114 = pneg %p113
      // Predicated region
      $region9: #{tpu_custom_call.1} parent=5 // pred_check
        _
      $region10: #{tpu_custom_call.1} parent=5 // pred_check_branch
        %116 = sbr.rel (%p113) target = $region12
      $region11: #{tpu_custom_call.1} parent=5 // pred_region
        %s117 = ssub.s32 %s14, 1
        // Predicated region
        $region13: #{tpu_custom_call.1} parent=11 // pred_check
          %p118 = pneg %p35
        $region14: #{tpu_custom_call.1} parent=11 // pred_check_branch
          %120 = sbr.rel (%p118) target = $region16
        $region15: #{tpu_custom_call.1} parent=11 // pred_region
          %122 = vsyncadd [#allocation3], 0
          %s123 = sshll.u32 %s0, 4
          %s124 = int_to_ptr.hbm [resolvable:$true] %s123
          %s125 = sshll.u32 [#allocation2], 4
          %s126 = int_to_ptr.vmem [resolvable:$true] %s125
          %131 = dma.hbm_to_vmem [thread:$0]  %s124, 256, %s126, [#allocation3], 128, 128, 8
        $region16: #{tpu_custom_call.1} parent=11 // pred_fallthru
          _
        // Predicated region
        $region17: #{tpu_custom_call.1} parent=11 // pred_check
          %p132 = pneg %p56
        $region18: #{tpu_custom_call.1} parent=11 // pred_check_branch
          %134 = sbr.rel (%p132) target = $region20
        $region19: #{tpu_custom_call.1} parent=11 // pred_region
          %136 = vsyncadd [#allocation6], 0
          %s137 = sshll.u32 %s1, 4
          %s138 = int_to_ptr.hbm [resolvable:$true] %s137
          %s139 = sshll.u32 [#allocation5], 4
          %s140 = int_to_ptr.vmem [resolvable:$true] %s139
          %145 = dma.hbm_to_vmem [thread:$0]  %s138, 1024, %s140, [#allocation6], 128, 128, 8
        $region20: #{tpu_custom_call.1} parent=11 // pred_fallthru
          _
        // Predicated region
        $region21: #{tpu_custom_call.1} parent=11 // pred_check
          %p146 = pneg %p77
        $region22: #{tpu_custom_call.1} parent=11 // pred_check_branch
          %148 = sbr.rel (%p146) target = $region24
        $region23: #{tpu_custom_call.1} parent=11 // pred_region
          _
        $region24: #{tpu_custom_call.1} parent=11 // pred_fallthru
          _
      $region12: #{tpu_custom_call.1} parent=5 // pred_fallthru
        _
      %p149 = scmp.lt.s32.totalorder %s14, 2
      // Predicated region
      $region25: #{tpu_custom_call.1} parent=5 // pred_check
        %p150 = pneg %p149
      $region26: #{tpu_custom_call.1} parent=5 // pred_check_branch
        %152 = sbr.rel (%p150) target = $region28
      $region27: #{tpu_custom_call.1} parent=5 // pred_region
        _
      $region28: #{tpu_custom_call.1} parent=5 // pred_fallthru
        _
      %p153 = scmp.le.s32.totalorder 1, %s14
      %p154 = scmp.lt.s32.totalorder %s14, 3
      %p155 = pnand %p153, %p154
      %p156 = pneg %p155
      // Predicated region
      $region29: #{tpu_custom_call.1} parent=5 // pred_check
        _
      $region30: #{tpu_custom_call.1} parent=5 // pred_check_branch
        %158 = sbr.rel (%p155) target = $region32
      $region31: #{tpu_custom_call.1} parent=5 // pred_region
        %s159 = ssub.s32 %s14, 1
        // Predicated region
        $region33: #{tpu_custom_call.1} parent=31 // pred_check
          %p160 = pneg %p35
        $region34: #{tpu_custom_call.1} parent=31 // pred_check_branch
          %162 = sbr.rel (%p160) target = $region36
        $region35: #{tpu_custom_call.1} parent=31 // pred_region
          %164 = dma.done [#allocation3], 256
        $region36: #{tpu_custom_call.1} parent=31 // pred_fallthru
          _
        // Predicated region
        $region37: #{tpu_custom_call.1} parent=31 // pred_check
          %p165 = pneg %p56
        $region38: #{tpu_custom_call.1} parent=31 // pred_check_branch
          %167 = sbr.rel (%p165) target = $region40
        $region39: #{tpu_custom_call.1} parent=31 // pred_region
          %169 = dma.done [#allocation6], 1024
        $region40: #{tpu_custom_call.1} parent=31 // pred_fallthru
          _
        %p170 = pneg %p35
        %p171 = pneg %p32
        %p172 = pneg %p56
        %p173 = pneg %p53
        %p174 = pneg %p77
        %p175 = pneg %p74
        %p176 = pneg %p103
        %p177 = pneg %p100
        %s178 = sand.u32 %s90, 1
        %s179 = scalar_lea.sflag [#allocation4], %s178
        %s180 = sand.u32 %s90, 1
        %s181 = smul.addr %s180, 16
        %s182 = scalar_lea.vmem [#allocation7], %s181
        %v183 = vld [vmem:[#allocation2] sm:$0xff]
        %v184 = vld [vmem:[#allocation2 + $0x8] sm:$0xff]
        %v185 = vld [vmem:[#allocation5] sm:$0xff]
        %v186 = vld [vmem:[#allocation5 + $0x8] sm:$0xff]
        %v187 = vld [vmem:[#allocation5 + $0x10] sm:$0xff]
        %v188 = vld [vmem:[#allocation5 + $0x18] sm:$0xff]
        %v189 = vld [vmem:[#allocation5 + $0x20] sm:$0xff]
        %v190 = vld [vmem:[#allocation5 + $0x28] sm:$0xff]
        %v191 = vld [vmem:[#allocation5 + $0x30] sm:$0xff]
        %v192 = vld [vmem:[#allocation5 + $0x38] sm:$0xff]
        %v193 = vld [vmem:[%s2] sm:$0x1]
        %v195 = vperm.slane %v193, 0
        %vm197 = vcmask 523264
        %v199 = vsel %vm197, %v183, 0
        %v202 = vsel %vm197, %v184, 0
        %204 = vmatpush.msra.mxu0 0.0
        %205 = vmatpush.msra.mxu0 0.0
        %206 = vmatpush.msra.mxu0 0.0
        %207 = vmatpush.msra.mxu0 0.0
        %208 = vmatpush.msra.mxu0 0.0
        %209 = vmatpush.msra.mxu0 0.0
        %210 = vmatpush.msra.mxu0 0.0
        %211 = vmatpush.msra.mxu0 0.0
        %212 = vmatpush.msra.mxu0 %v192
        %213 = vmatpush.msra.mxu0 %v191
        %214 = vmatpush.msra.mxu0 %v190
        %215 = vmatpush.msra.mxu0 %v189
        %216 = vmatpush.msra.mxu0 %v188
        %217 = vmatpush.msra.mxu0 %v187
        %218 = vmatpush.msra.mxu0 %v186
        %219 = vmatpush.msra.mxu0 %v185
        %220 = vmatmul.f32.gmra.mxu0 %v199
        %v221 = vpop.f32.mrf.mxu0
        %v222 = vadd.f32 %v195, %v221
        %223 = vmatmul.f32.gmra.mxu0 %v202
        %v224 = vpop.f32.mrf.mxu0
        %v225 = vadd.f32 %v195, %v224
        %226 = vdwg.mxu0
        %227 = vst [vmem:[%s182] sm:$0xff] %v222
        %228 = vst [vmem:[%s182 + $0x8] sm:$0xff] %v225
        %s229 = sand.u32 %s90, 1
        %s230 = scalar_lea.sflag [#allocation4], %s229
        %s231 = sand.u32 %s90, 1
        %s232 = smul.addr %s231, 16
        %s233 = scalar_lea.vmem [#allocation7], %s232
        // Predicated region
        $region41: #{tpu_custom_call.1} parent=31 // pred_check
          %p234 = pneg %p100
        $region42: #{tpu_custom_call.1} parent=31 // pred_check_branch
          %236 = sbr.rel (%p234) target = $region44
        $region43: #{tpu_custom_call.1} parent=31 // pred_region
          %238 = vsyncadd %s230, 0
          %s239 = smul.addr %s19, 2
          %s240 = smul.addr %s239, 8
          %s241 = scalar_lea.hbm %s3, %s240
          %s242 = sshll.u32 %s233, 4
          %s243 = int_to_ptr.vmem [resolvable:$true] %s242
          %s244 = sshll.u32 %s241, 4
          %s245 = int_to_ptr.hbm [resolvable:$true] %s244
          %250 = dma.vmem_to_hbm [thread:$0]  %s243, 256, %s245, %s230, 128, 128, 8
        $region44: #{tpu_custom_call.1} parent=31 // pred_fallthru
          _
      $region32: #{tpu_custom_call.1} parent=5 // pred_fallthru
        _
      %p251 = scmp.le.s32.totalorder 2, %s14
      // Predicated region
      $region45: #{tpu_custom_call.1} parent=5 // pred_check
        %p252 = pneg %p251
      $region46: #{tpu_custom_call.1} parent=5 // pred_check_branch
        %254 = sbr.rel (%p252) target = $region48
      $region47: #{tpu_custom_call.1} parent=5 // pred_region
        %s255 = ssub.s32 %s14, 2
        // Predicated region
        $region49: #{tpu_custom_call.1} parent=47 // pred_check
          %p256 = pneg %p106
        $region50: #{tpu_custom_call.1} parent=47 // pred_check_branch
          %258 = sbr.rel (%p256) target = $region52
        $region51: #{tpu_custom_call.1} parent=47 // pred_region
          %s259 = sand.u32 %s91, 1
          %s260 = scalar_lea.sflag [#allocation4], %s259
          %s261 = sand.u32 %s91, 1
          %s262 = smul.addr %s261, 16
          %s263 = scalar_lea.vmem [#allocation7], %s262
          %265 = dma.done %s260, 256
        $region52: #{tpu_custom_call.1} parent=47 // pred_fallthru
          _
      $region48: #{tpu_custom_call.1} parent=5 // pred_fallthru
        _
    $region6: #{tpu_custom_call.1} parent=1 // loop_footer
      %s18 = sadd.s32 1, %s14
    $region7: #{tpu_custom_call.1} parent=1 // loop_footer_branch
      %13 = sbr.rel target = $region3
    $region8: #{tpu_custom_call.1} parent=1 // loop_exit
      _
    %266 = vsyncpa [#allocation3], 1
    %s267 = scalar_lea.sflag [#allocation3], 1
    %268 = vsyncpa %s267, 1
    %269 = vsyncpa [#allocation6], 1
    %270 = vsyncpa [#allocation4], 1
    %s271 = scalar_lea.sflag [#allocation4], 1
    %272 = vsyncpa %s271, 1

</llo_original>
